<compile_context>
chip_gen: v7x
topology: tpu7x:2x2x1
jax: 0.10.0
libtpu: 0.0.40
codegen_flags: <defaults>
</compile_context>

<pallas_src>
import functools

import jax
import jax.numpy as jnp
from jax.experimental import pallas as pl
from jax.experimental.pallas import tpu as pltpu

KH = KW = 3
STRIDE = 2
PAD = 1


def _round_up(x, m):
    return ((x + m - 1) // m) * m


def _cdown_kernel(p_ref, w_ref, b_ref, o_ref, acc_ref):
    """Tiled bf16 MXU matmul (f32 VMEM accumulator) + bias + ReLU epilogue."""
    k = pl.program_id(2)

    @pl.when(k == 0)
    def _():
        acc_ref[...] = jnp.zeros_like(acc_ref)

    acc_ref[...] += jnp.dot(p_ref[...], w_ref[...],
                            preferred_element_type=jnp.float32)

    @pl.when(k == pl.num_programs(2) - 1)
    def _():
        o_ref[...] = jnp.maximum(acc_ref[...] + b_ref[...], 0.0)


def _im2col(x, Ho, Wo):
    """x: (N, C, H, W) -> (N*Ho*Wo, C*KH*KW); patch flattened in (c, kh, kw)
    order to match PyTorch weight.reshape(Cout, Cin*KH*KW)."""
    N, C, H, W = x.shape
    xp = jnp.pad(x, ((0, 0), (0, 0), (PAD, PAD), (PAD, PAD)))
    cols = []
    for kh in range(KH):
        for kw in range(KW):
            cols.append(
                xp[:, :,
                   kh:kh + STRIDE * (Ho - 1) + 1:STRIDE,
                   kw:kw + STRIDE * (Wo - 1) + 1:STRIDE])      # (N, C, Ho, Wo)
    p = jnp.stack(cols, axis=2)            # (N, C, KH*KW, Ho, Wo)
    p = p.transpose(0, 3, 4, 1, 2)         # (N, Ho, Wo, C, KH*KW)
    return p.reshape(N * Ho * Wo, C * KH * KW)


def _pick_tile(dim, candidates):
    """Largest candidate that evenly divides `dim` (dim is a multiple of 128)."""
    for c in candidates:
        if dim % c == 0:
            return c
    return 128


@functools.partial(jax.jit)
def cdown_forward(xr, xi, wr, wi, br, bi):
    """xr, xi: (N, Cin, H, W) float32.  wr, wi: (Cout, Cin, 3, 3).  br, bi: (Cout,).
    Returns (real, imag), each (N, Cout, Ho, Wo) float32 (NCHW, like PyTorch)."""
    N, Cin, H, W = xr.shape
    Cout = wr.shape[0]
    Ho = (H + 2 * PAD - KH) // STRIDE + 1
    Wo = (W + 2 * PAD - KW) // STRIDE + 1
    K = Cin * KH * KW
    M = N * Ho * Wo

    # --- fused complex operands (wrapper-side glue; XLA fuses the pads/casts) ---
    # TODO(synk): next-order lever is building the 9 shifted patch views inside
    # the kernel (removes the im2col HBM round trip); kept in the wrapper here.
    pr = _im2col(xr, Ho, Wo)                               # (M, K)
    pi = _im2col(xi, Ho, Wo)                               # (M, K)
    p = jnp.concatenate([pr, pi], axis=1)                  # (M, 2K)

    wrm = wr.reshape(Cout, K).T                            # (K, Cout)
    wim = wi.reshape(Cout, K).T                            # (K, Cout)
    wfused = jnp.block([[wrm, wim], [-wim, wrm]])          # (2K, 2Cout)
    bfused = jnp.concatenate([br - bi, br + bi])           # (2Cout,)

    # --- pad to TPU-friendly (lane-dense, bf16-tile-aligned) shapes ---
    K2 = 2 * K
    Kp = _round_up(K2, 128)          # contraction dim, 128-aligned
    Np = _round_up(2 * Cout, 128)    # output lanes, 128-aligned (dense stores)

    # Tile selection: big M tiles amortize per-step overhead; K / N tiles cap
    # VMEM so the same kernel scales to large Cin / Cout.
    if M >= 512:
        TM = 512
    elif M >= 256:
        TM = 256
    else:
        TM = max(16, _round_up(M, 16))   # bf16 sublane packing -> multiple of 16
    Mp = _round_up(M, TM)
    TK = _pick_tile(Kp, (512, 256, 128))
    TN = _pick_tile(Np, (512, 256, 128))

    p_pad = jnp.pad(p.astype(jnp.bfloat16), ((0, Mp - M), (0, Kp - K2)))
    w_pad = jnp.pad(wfused.astype(jnp.bfloat16), ((0, Kp - K2), (0, Np - 2 * Cout)))
    b_pad = jnp.pad(bfused.astype(jnp.float32), (0, Np - 2 * Cout)).reshape(1, Np)

    grid = (Mp // TM, Np // TN, Kp // TK)
    out = pl.pallas_call(
        _cdown_kernel,
        out_shape=jax.ShapeDtypeStruct((Mp, Np), jnp.float32),
        grid=grid,
        in_specs=[
            pl.BlockSpec((TM, TK), lambda i, j, k: (i, k)),   # patch tiles stream over M/K
            pl.BlockSpec((TK, TN), lambda i, j, k: (k, j)),   # fused weights
            pl.BlockSpec((1, TN), lambda i, j, k: (0, j)),    # fused bias
        ],
        out_specs=pl.BlockSpec((TM, TN), lambda i, j, k: (i, j)),
        scratch_shapes=[pltpu.VMEM((TM, TN), jnp.float32)],   # f32 accumulator
        compiler_params=pltpu.CompilerParams(
            dimension_semantics=("parallel", "parallel", "arbitrary")),
    )(p_pad, w_pad, b_pad)

    out = out[:M, :2 * Cout]                            # drop row/lane padding
    o_r = out[:, :Cout].reshape(N, Ho, Wo, Cout).transpose(0, 3, 1, 2)
    o_i = out[:, Cout:].reshape(N, Ho, Wo, Cout).transpose(0, 3, 1, 2)
    return o_r, o_i


if __name__ == "__main__":
    key = jax.random.PRNGKey(0)
    k1, k2, k3, k4, k5, k6 = jax.random.split(key, 6)

    N, Cin, Cout, H, W = 2, 4, 8, 16, 16
    xr = jax.random.normal(k1, (N, Cin, H, W), jnp.float32)
    xi = jax.random.normal(k2, (N, Cin, H, W), jnp.float32)

    # deterministic synthetic parameters (kaiming-ish scale)
    fan_in = Cin * KH * KW
    scale = 1.0 / (fan_in ** 0.5)
    wr = jax.random.normal(k3, (Cout, Cin, KH, KW), jnp.float32) * scale
    wi = jax.random.normal(k4, (Cout, Cin, KH, KW), jnp.float32) * scale
    br = jax.random.normal(k5, (Cout,), jnp.float32) * scale
    bi = jax.random.normal(k6, (Cout,), jnp.float32) * scale

    o_r, o_i = cdown_forward(xr, xi, wr, wi, br, bi)
    jax.block_until_ready((o_r, o_i))

    # reference check against XLA conv (same semantics as the PyTorch module)
    def conv(x, w, b):
        y = jax.lax.conv_general_dilated(
            x, w, (STRIDE, STRIDE), ((PAD, PAD), (PAD, PAD)),
            dimension_numbers=("NCHW", "OIHW", "NCHW"))
        return y + b[None, :, None, None]

    ref_r = jnp.maximum(conv(xr, wr, br) - conv(xi, wi, bi), 0.0)
    ref_i = jnp.maximum(conv(xi, wr, br) + conv(xr, wi, bi), 0.0)
    # bf16 matmul operands (f32 accumulation) -> loosened tolerance
    assert jnp.allclose(o_r, ref_r, atol=5e-2, rtol=5e-2)
    assert jnp.allclose(o_i, ref_i, atol=5e-2, rtol=5e-2)

    print("KERNEL_OK")
</pallas_src>

<mosaic_0001>
module attributes {stable_mosaic.version = 11 : i64} {
  func.func @_cdown_kernel(%arg0: i32, %arg1: i32, %arg2: i32, %arg3: memref<128x128xbf16, #tpu.memory_space<vmem>>, %arg4: memref<128x128xbf16, #tpu.memory_space<vmem>>, %arg5: memref<1x128xf32, #tpu.memory_space<vmem>>, %arg6: memref<128x128xf32, #tpu.memory_space<vmem>>, %arg7: memref<128x128xf32, #tpu.memory_space<vmem>>) attributes {dimension_semantics = [#tpu.dimension_semantics<parallel>, #tpu.dimension_semantics<parallel>, #tpu.dimension_semantics<arbitrary>], iteration_bounds = array<i64: 1, 1, 1>, scalar_prefetch = 0 : i64, scratch_operands = 1 : i64, tpu.core_type = #tpu.core_type<tc>, window_params = [{transform_indices = @transform_0, window_bounds = array<i64: 128, 128>}, {transform_indices = @transform_1, window_bounds = array<i64: 128, 128>}, {transform_indices = @transform_2, window_bounds = array<i64: 1, 128>}, {transform_indices = @transform_3, window_bounds = array<i64: 128, 128>}]} {
    %c0_i32 = arith.constant 0 : i32
    %0 = arith.cmpi eq, %arg2, %c0_i32 : i32
    %1 = arith.extui %0 : i1 to i32
    %c0_i32_0 = arith.constant 0 : i32
    %2 = arith.cmpi ne, %1, %c0_i32_0 : i32
    scf.if %2 {
      %cst_10 = arith.constant 0.000000e+00 : f32
      %12 = vector.broadcast %cst_10 : f32 to vector<128x128xf32>
      %c0_11 = arith.constant 0 : index
      %c0_12 = arith.constant 0 : index
      %13 = vector.load %arg7[%c0_11, %c0_12] : memref<128x128xf32, #tpu.memory_space<vmem>>, vector<128x128xf32>
      tpu.vector_store %arg7[%c0_11, %c0_12], %12 {strides = array<i32>} : memref<128x128xf32, #tpu.memory_space<vmem>>, vector<128x128xf32>,
    } else {
    }
    %c0 = arith.constant 0 : index
    %c0_1 = arith.constant 0 : index
    %3 = vector.load %arg7[%c0, %c0_1] : memref<128x128xf32, #tpu.memory_space<vmem>>, vector<128x128xf32>
    %c0_2 = arith.constant 0 : index
    %c0_3 = arith.constant 0 : index
    %4 = vector.load %arg3[%c0_2, %c0_3] : memref<128x128xbf16, #tpu.memory_space<vmem>>, vector<128x128xbf16>
    %c0_4 = arith.constant 0 : index
    %c0_5 = arith.constant 0 : index
    %5 = vector.load %arg4[%c0_4, %c0_5] : memref<128x128xbf16, #tpu.memory_space<vmem>>, vector<128x128xbf16>
    %cst = arith.constant dense<0.000000e+00> : vector<128x128xf32>
    %6 = tpu.matmul %4, %5, %cst {dimension_numbers = #tpu.dot_dimension_numbers<[1], [0], [0], [1], [0, 0, 1, 1], [], []>} : vector<128x128xbf16>, vector<128x128xbf16>, vector<128x128xf32> -> vector<128x128xf32>
    %7 = arith.addf %3, %6 : vector<128x128xf32>
    %c0_6 = arith.constant 0 : index
    %c0_7 = arith.constant 0 : index
    %8 = vector.load %arg7[%c0_6, %c0_7] : memref<128x128xf32, #tpu.memory_space<vmem>>, vector<128x128xf32>
    tpu.vector_store %arg7[%c0_6, %c0_7], %7 {strides = array<i32>} : memref<128x128xf32, #tpu.memory_space<vmem>>, vector<128x128xf32>,
    %c0_i32_8 = arith.constant 0 : i32
    %9 = arith.cmpi eq, %arg2, %c0_i32_8 : i32
    %10 = arith.extui %9 : i1 to i32
    %c0_i32_9 = arith.constant 0 : i32
    %11 = arith.cmpi ne, %10, %c0_i32_9 : i32
    scf.if %11 {
      %c0_10 = arith.constant 0 : index
      %c0_11 = arith.constant 0 : index
      %12 = vector.load %arg7[%c0_10, %c0_11] : memref<128x128xf32, #tpu.memory_space<vmem>>, vector<128x128xf32>
      %c0_12 = arith.constant 0 : index
      %c0_13 = arith.constant 0 : index
      %13 = vector.load %arg5[%c0_12, %c0_13] : memref<1x128xf32, #tpu.memory_space<vmem>>, vector<1x128xf32>
      %14 = vector.broadcast %13 : vector<1x128xf32> to vector<128x128xf32>
      %15 = arith.addf %12, %14 : vector<128x128xf32>
      %cst_14 = arith.constant 0.000000e+00 : f32
      %16 = vector.broadcast %cst_14 : f32 to vector<128x128xf32>
      %17 = arith.maximumf %15, %16 : vector<128x128xf32>
      %c0_15 = arith.constant 0 : index
      %c0_16 = arith.constant 0 : index
      %18 = vector.load %arg6[%c0_15, %c0_16] : memref<128x128xf32, #tpu.memory_space<vmem>>, vector<128x128xf32>
      tpu.vector_store %arg6[%c0_15, %c0_16], %17 {strides = array<i32>} : memref<128x128xf32, #tpu.memory_space<vmem>>, vector<128x128xf32>,
    } else {
    }
    return
  }
  func.func @transform_0(%arg0: i32, %arg1: i32, %arg2: i32) -> (i32, i32) {
    %c0_i32 = arith.constant 0 : i32
    return %arg0, %arg2 : i32, i32
  }
  func.func @transform_1(%arg0: i32, %arg1: i32, %arg2: i32) -> (i32, i32) {
    %c0_i32 = arith.constant 0 : i32
    return %arg2, %arg1 : i32, i32
  }
  func.func @transform_2(%arg0: i32, %arg1: i32, %arg2: i32) -> (i32, i32) {
    %c0_i32 = arith.constant 0 : i32
    %c0_i32_0 = arith.constant 0 : i32
    return %c0_i32, %arg1 : i32, i32
  }
  func.func @transform_3(%arg0: i32, %arg1: i32, %arg2: i32) -> (i32, i32) {
    %c0_i32 = arith.constant 0 : i32
    return %arg0, %arg1 : i32, i32
  }
}

</mosaic_0001>

<llo_original>
// kernel: cdown_forward.1
$region0: #{cdown_forward.1}
  #allocation0 [shape = 'u32[]', space=smem, size = 0x4, offset = 0x4, fixed_abs, tag = 'smem constant byte address 0x4 - core index']
  #allocation1 [shape = 'u32[144,128]{1,0:T(1,128)}', space=vmem, size = 0x12000, scoped, tag = 'internal scratch']
  #allocation2 [shape = 'f32[128,128]{1,0:T(8,128)}', space=vmem, size = 0x10000, scoped, tag = 'scratch operand']
  %s0 = inlined_call_operand.vmem [shape: bf16[128,128], index: 0, kind: input, shape index: {}]
  %s1 = inlined_call_operand.vmem [shape: bf16[128,128], index: 1, kind: input, shape index: {}]
  %s2 = inlined_call_operand.vmem [shape: f32[1,128], index: 2, kind: input, shape index: {}]
  %s3 = inlined_call_operand.vmem [shape: f32[128,128], index: 3, kind: output, shape index: {}]
  %s4 = sld [smem:[#allocation0]]
  $region30: #{cdown_forward.1} parent=0
    _
  %s6 = ssub.s32 1, %s4
  %s7 = scalar_select 0, %s6, %s4
  // Predicated region
  $region2: #{cdown_forward.1} parent=0 // pred_check
    _
  $region3: #{cdown_forward.1} parent=0 // pred_check_branch
    %9 = sbr.rel (0) target = $region5
  $region4: #{cdown_forward.1} parent=0 // pred_region
    _
  $region5: #{cdown_forward.1} parent=0 // pred_fallthru
    _
  // Predicated region
  $region6: #{cdown_forward.1} parent=0 // pred_check
    _
  $region7: #{cdown_forward.1} parent=0 // pred_check_branch
    %11 = sbr.rel (0) target = $region9
  $region8: #{cdown_forward.1} parent=0 // pred_region
    _
  $region9: #{cdown_forward.1} parent=0 // pred_fallthru
    _
  // Predicated region
  $region10: #{cdown_forward.1} parent=0 // pred_check
    _
  $region11: #{cdown_forward.1} parent=0 // pred_check_branch
    %13 = sbr.rel (0) target = $region13
  $region12: #{cdown_forward.1} parent=0 // pred_region
    _
  $region13: #{cdown_forward.1} parent=0 // pred_fallthru
    _
  %p15 = scmp.eq.s32.totalorder 0, 0
  // Predicated region
  $region14: #{cdown_forward.1} parent=0 // pred_check
    %p16 = pneg %p15
  $region15: #{cdown_forward.1} parent=0 // pred_check_branch
    %18 = sbr.rel (%p16) target = $region17
  $region16: #{cdown_forward.1} parent=0 // pred_region
    %19 = vst [vmem:[#allocation2] sm:$0xff] 0.0
    %20 = vst [vmem:[#allocation2 + $0x8] sm:$0xff] 0.0
    %21 = vst [vmem:[#allocation2 + $0x10] sm:$0xff] 0.0
    %22 = vst [vmem:[#allocation2 + $0x18] sm:$0xff] 0.0
    %23 = vst [vmem:[#allocation2 + $0x20] sm:$0xff] 0.0
    %24 = vst [vmem:[#allocation2 + $0x28] sm:$0xff] 0.0
    %25 = vst [vmem:[#allocation2 + $0x30] sm:$0xff] 0.0
    %26 = vst [vmem:[#allocation2 + $0x38] sm:$0xff] 0.0
    %27 = vst [vmem:[#allocation2 + $0x40] sm:$0xff] 0.0
    %28 = vst [vmem:[#allocation2 + $0x48] sm:$0xff] 0.0
    %29 = vst [vmem:[#allocation2 + $0x50] sm:$0xff] 0.0
    %30 = vst [vmem:[#allocation2 + $0x58] sm:$0xff] 0.0
    %31 = vst [vmem:[#allocation2 + $0x60] sm:$0xff] 0.0
    %32 = vst [vmem:[#allocation2 + $0x68] sm:$0xff] 0.0
    %33 = vst [vmem:[#allocation2 + $0x70] sm:$0xff] 0.0
    %34 = vst [vmem:[#allocation2 + $0x78] sm:$0xff] 0.0
  $region17: #{cdown_forward.1} parent=0 // pred_fallthru
    _
  %v35 = vld [vmem:[#allocation2] sm:$0xff]
  %v36 = vld [vmem:[#allocation2 + $0x8] sm:$0xff]
  %v37 = vld [vmem:[#allocation2 + $0x10] sm:$0xff]
  %v38 = vld [vmem:[#allocation2 + $0x18] sm:$0xff]
  %v39 = vld [vmem:[#allocation2 + $0x20] sm:$0xff]
  %v40 = vld [vmem:[#allocation2 + $0x28] sm:$0xff]
  %v41 = vld [vmem:[#allocation2 + $0x30] sm:$0xff]
  %v42 = vld [vmem:[#allocation2 + $0x38] sm:$0xff]
  %v43 = vld [vmem:[#allocation2 + $0x40] sm:$0xff]
  %v44 = vld [vmem:[#allocation2 + $0x48] sm:$0xff]
  %v45 = vld [vmem:[#allocation2 + $0x50] sm:$0xff]
  %v46 = vld [vmem:[#allocation2 + $0x58] sm:$0xff]
  %v47 = vld [vmem:[#allocation2 + $0x60] sm:$0xff]
  %v48 = vld [vmem:[#allocation2 + $0x68] sm:$0xff]
  %v49 = vld [vmem:[#allocation2 + $0x70] sm:$0xff]
  %v50 = vld [vmem:[#allocation2 + $0x78] sm:$0xff]
  %v51 = vld [vmem:[%s0] sm:$0xf]
  %v52 = vld [vmem:[%s0 + $0x4] sm:$0xf]
  %v53 = vld [vmem:[%s0 + $0x8] sm:$0xf]
  %v54 = vld [vmem:[%s0 + $0xc] sm:$0xf]
  %v55 = vld [vmem:[%s0 + $0x10] sm:$0xf]
  %v56 = vld [vmem:[%s0 + $0x14] sm:$0xf]
  %v57 = vld [vmem:[%s0 + $0x18] sm:$0xf]
  %v58 = vld [vmem:[%s0 + $0x1c] sm:$0xf]
  %v59 = vld [vmem:[%s0 + $0x20] sm:$0xf]
  %v60 = vld [vmem:[%s0 + $0x24] sm:$0xf]
  %v61 = vld [vmem:[%s0 + $0x28] sm:$0xf]
  %v62 = vld [vmem:[%s0 + $0x2c] sm:$0xf]
  %v63 = vld [vmem:[%s0 + $0x30] sm:$0xf]
  %v64 = vld [vmem:[%s0 + $0x34] sm:$0xf]
  %v65 = vld [vmem:[%s0 + $0x38] sm:$0xf]
  %v66 = vld [vmem:[%s0 + $0x3c] sm:$0xf]
  %v67 = vld [vmem:[%s1] sm:$0xf]
  %v68 = vld [vmem:[%s1 + $0x4] sm:$0xf]
  %v69 = vld [vmem:[%s1 + $0x8] sm:$0xf]
  %v70 = vld [vmem:[%s1 + $0xc] sm:$0xf]
  %v71 = vld [vmem:[%s1 + $0x10] sm:$0xf]
  %v72 = vld [vmem:[%s1 + $0x14] sm:$0xf]
  %v73 = vld [vmem:[%s1 + $0x18] sm:$0xf]
  %v74 = vld [vmem:[%s1 + $0x1c] sm:$0xf]
  %v75 = vld [vmem:[%s1 + $0x20] sm:$0xf]
  %v76 = vld [vmem:[%s1 + $0x24] sm:$0xf]
  %v77 = vld [vmem:[%s1 + $0x28] sm:$0xf]
  %v78 = vld [vmem:[%s1 + $0x2c] sm:$0xf]
  %v79 = vld [vmem:[%s1 + $0x30] sm:$0xf]
  %v80 = vld [vmem:[%s1 + $0x34] sm:$0xf]
  %v81 = vld [vmem:[%s1 + $0x38] sm:$0xf]
  %v82 = vld [vmem:[%s1 + $0x3c] sm:$0xf]
  %v99 = vunpack.c.l.b16 %v51
  %v100 = vunpack.c.l.b16 %v52
  %v101 = vunpack.c.l.b16 %v53
  %v102 = vunpack.c.l.b16 %v54
  %v103 = vunpack.c.l.b16 %v55
  %v104 = vunpack.c.l.b16 %v56
  %v105 = vunpack.c.l.b16 %v57
  %v106 = vunpack.c.l.b16 %v58
  %v107 = vunpack.c.l.b16 %v59
  %v108 = vunpack.c.l.b16 %v60
  %v109 = vunpack.c.l.b16 %v61
  %v110 = vunpack.c.l.b16 %v62
  %v111 = vunpack.c.l.b16 %v63
  %v112 = vunpack.c.l.b16 %v64
  %v113 = vunpack.c.l.b16 %v65
  %v114 = vunpack.c.l.b16 %v66
  %v115 = vpack.c.b16 %v100, %v99
  %v116 = vpack.c.b16 %v102, %v101
  %v117 = vpack.c.b16 %v104, %v103
  %v118 = vpack.c.b16 %v106, %v105
  %v119 = vpack.c.b16 %v108, %v107
  %v120 = vpack.c.b16 %v110, %v109
  %v121 = vpack.c.b16 %v112, %v111
  %v122 = vpack.c.b16 %v114, %v113
  %v147 = vunpack.c.l.b16 %v67
  %v148 = vunpack.c.l.b16 %v68
  %v149 = vunpack.c.l.b16 %v69
  %v150 = vunpack.c.l.b16 %v70
  %v151 = vunpack.c.l.b16 %v71
  %v152 = vunpack.c.l.b16 %v72
  %v153 = vunpack.c.l.b16 %v73
  %v154 = vunpack.c.l.b16 %v74
  %v155 = vunpack.c.l.b16 %v75
  %v156 = vunpack.c.l.b16 %v76
  %v157 = vunpack.c.l.b16 %v77
  %v158 = vunpack.c.l.b16 %v78
  %v159 = vunpack.c.l.b16 %v79
  %v160 = vunpack.c.l.b16 %v80
  %v161 = vunpack.c.l.b16 %v81
  %v162 = vunpack.c.l.b16 %v82
  %v163 = vpack.c.b16 %v148, %v147
  %v164 = vpack.c.b16 %v150, %v149
  %v165 = vpack.c.b16 %v152, %v151
  %v166 = vpack.c.b16 %v154, %v153
  %v167 = vpack.c.b16 %v156, %v155
  %v168 = vpack.c.b16 %v158, %v157
  %v169 = vpack.c.b16 %v160, %v159
  %v170 = vpack.c.b16 %v162, %v161
  %179 = vmatprep.subr.bf16.mxu0 0
  %180 = vmatpush1.bf16.msra.mxu0 %v163
  %181 = vmatprep.subr.bf16.mxu0 0
  %182 = vmatpush1.bf16.msra.mxu0 %v164
  %183 = vmatprep.subr.bf16.mxu0 0
  %184 = vmatpush1.bf16.msra.mxu0 %v165
  %185 = vmatprep.subr.bf16.mxu0 0
  %186 = vmatpush1.bf16.msra.mxu0 %v166
  %187 = vmatprep.subr.bf16.mxu0 0
  %188 = vmatpush1.bf16.msra.mxu0 %v167
  %189 = vmatprep.subr.bf16.mxu0 0
  %190 = vmatpush1.bf16.msra.mxu0 %v168
  %191 = vmatprep.subr.bf16.mxu0 0
  %192 = vmatpush1.bf16.msra.mxu0 %v169
  %193 = vmatprep.subr.bf16.mxu0 0
  %194 = vmatpush1.bf16.msra.mxu0 %v170
  %195 = vmatprep.subr.bf16.mxu0 0
  %196 = vmatpush1.bf16.msra.mxu0 0
  %197 = vmatprep.subr.bf16.mxu0 0
  %198 = vmatpush1.bf16.msra.mxu0 0
  %199 = vmatprep.subr.bf16.mxu0 0
  %200 = vmatpush1.bf16.msra.mxu0 0
  %201 = vmatprep.subr.bf16.mxu0 0
  %202 = vmatpush1.bf16.msra.mxu0 0
  %203 = vmatprep.subr.bf16.mxu0 0
  %204 = vmatpush1.bf16.msra.mxu0 0
  %205 = vmatprep.subr.bf16.mxu0 0
  %206 = vmatpush1.bf16.msra.mxu0 0
  %207 = vmatprep.subr.bf16.mxu0 0
  %208 = vmatpush1.bf16.msra.mxu0 0
  %209 = vmatprep.subr.bf16.mxu0 0
  %210 = vmatpush1.bf16.msra.mxu0 0
  %211 = vmatprep.mubr.bf16.mxu0 0
  %212 = vmatmul.mubr.bf16.gmra.mrb[0].mxu0 %v115
  %v213 = vpop.f32.mrb[0].mxu0
  %v214 = vadd.f32 0.0, %v213
  %v215 = vpop.f32.mrb[0].mxu0
  %v216 = vpop.f32.mrb[0].mxu0
  %v217 = vadd.f32 0.0, %v216
  %v218 = vpop.f32.mrb[0].mxu0
  %219 = vmatprep.mubr.bf16.mxu0 0
  %220 = vmatmul.mubr.bf16.gmra.mrb[0].mxu0 %v116
  %v221 = vpop.f32.mrb[0].mxu0
  %v222 = vadd.f32 0.0, %v221
  %v223 = vpop.f32.mrb[0].mxu0
  %v224 = vpop.f32.mrb[0].mxu0
  %v225 = vadd.f32 0.0, %v224
  %v226 = vpop.f32.mrb[0].mxu0
  %227 = vmatprep.mubr.bf16.mxu0 0
  %228 = vmatmul.mubr.bf16.gmra.mrb[0].mxu0 %v117
  %v229 = vpop.f32.mrb[0].mxu0
  %v230 = vadd.f32 0.0, %v229
  %v231 = vpop.f32.mrb[0].mxu0
  %v232 = vpop.f32.mrb[0].mxu0
  %v233 = vadd.f32 0.0, %v232
  %v234 = vpop.f32.mrb[0].mxu0
  %235 = vmatprep.mubr.bf16.mxu0 0
  %236 = vmatmul.mubr.bf16.gmra.mrb[0].mxu0 %v118
  %v237 = vpop.f32.mrb[0].mxu0
  %v238 = vadd.f32 0.0, %v237
  %v239 = vpop.f32.mrb[0].mxu0
  %v240 = vpop.f32.mrb[0].mxu0
  %v241 = vadd.f32 0.0, %v240
  %v242 = vpop.f32.mrb[0].mxu0
  %243 = vmatprep.mubr.bf16.mxu0 0
  %244 = vmatmul.mubr.bf16.gmra.mrb[0].mxu0 %v119
  %v245 = vpop.f32.mrb[0].mxu0
  %v246 = vadd.f32 0.0, %v245
  %v247 = vpop.f32.mrb[0].mxu0
  %v248 = vpop.f32.mrb[0].mxu0
  %v249 = vadd.f32 0.0, %v248
  %v250 = vpop.f32.mrb[0].mxu0
  %251 = vmatprep.mubr.bf16.mxu0 0
  %252 = vmatmul.mubr.bf16.gmra.mrb[0].mxu0 %v120
  %v253 = vpop.f32.mrb[0].mxu0
  %v254 = vadd.f32 0.0, %v253
  %v255 = vpop.f32.mrb[0].mxu0
  %v256 = vpop.f32.mrb[0].mxu0
  %v257 = vadd.f32 0.0, %v256
  %v258 = vpop.f32.mrb[0].mxu0
  %259 = vmatprep.mubr.bf16.mxu0 0
  %260 = vmatmul.mubr.bf16.gmra.mrb[0].mxu0 %v121
  %v261 = vpop.f32.mrb[0].mxu0
  %v262 = vadd.f32 0.0, %v261
  %v263 = vpop.f32.mrb[0].mxu0
  %v264 = vpop.f32.mrb[0].mxu0
  %v265 = vadd.f32 0.0, %v264
  %v266 = vpop.f32.mrb[0].mxu0
  %267 = vmatprep.mubr.bf16.mxu0 0
  %268 = vmatmul.mubr.bf16.gmra.mrb[0].mxu0 %v122
  %v269 = vpop.f32.mrb[0].mxu0
  %v270 = vadd.f32 0.0, %v269
  %v271 = vpop.f32.mrb[0].mxu0
  %v272 = vpop.f32.mrb[0].mxu0
  %v273 = vadd.f32 0.0, %v272
  %v274 = vpop.f32.mrb[0].mxu0
  %275 = vdwg.mxu0
  %v276 = vadd.f32 %v35, %v214
  %v277 = vadd.f32 %v36, %v217
  %v278 = vadd.f32 %v37, %v222
  %v279 = vadd.f32 %v38, %v225
  %v280 = vadd.f32 %v39, %v230
  %v281 = vadd.f32 %v40, %v233
  %v282 = vadd.f32 %v41, %v238
  %v283 = vadd.f32 %v42, %v241
  %v284 = vadd.f32 %v43, %v246
  %v285 = vadd.f32 %v44, %v249
  %v286 = vadd.f32 %v45, %v254
  %v287 = vadd.f32 %v46, %v257
  %v288 = vadd.f32 %v47, %v262
  %v289 = vadd.f32 %v48, %v265
  %v290 = vadd.f32 %v49, %v270
  %v291 = vadd.f32 %v50, %v273
  %292 = vst [vmem:[#allocation2] sm:$0xff] %v276
  %293 = vst [vmem:[#allocation2 + $0x8] sm:$0xff] %v277
  %294 = vst [vmem:[#allocation2 + $0x10] sm:$0xff] %v278
  %295 = vst [vmem:[#allocation2 + $0x18] sm:$0xff] %v279
  %296 = vst [vmem:[#allocation2 + $0x20] sm:$0xff] %v280
  %297 = vst [vmem:[#allocation2 + $0x28] sm:$0xff] %v281
  %298 = vst [vmem:[#allocation2 + $0x30] sm:$0xff] %v282
  %299 = vst [vmem:[#allocation2 + $0x38] sm:$0xff] %v283
  %300 = vst [vmem:[#allocation2 + $0x40] sm:$0xff] %v284
  %301 = vst [vmem:[#allocation2 + $0x48] sm:$0xff] %v285
  %302 = vst [vmem:[#allocation2 + $0x50] sm:$0xff] %v286
  %303 = vst [vmem:[#allocation2 + $0x58] sm:$0xff] %v287
  %304 = vst [vmem:[#allocation2 + $0x60] sm:$0xff] %v288
  %305 = vst [vmem:[#allocation2 + $0x68] sm:$0xff] %v289
  %306 = vst [vmem:[#allocation2 + $0x70] sm:$0xff] %v290
  %307 = vst [vmem:[#allocation2 + $0x78] sm:$0xff] %v291
  // Predicated region
  $region18: #{cdown_forward.1} parent=0 // pred_check
    %p308 = pneg %p15
  $region19: #{cdown_forward.1} parent=0 // pred_check_branch
    %310 = sbr.rel (%p308) target = $region21
  $region20: #{cdown_forward.1} parent=0 // pred_region
    %v311 = vld [vmem:[#allocation2] sm:$0xff]
    %v312 = vld [vmem:[#allocation2 + $0x8] sm:$0xff]
    %v313 = vld [vmem:[#allocation2 + $0x10] sm:$0xff]
    %v314 = vld [vmem:[#allocation2 + $0x18] sm:$0xff]
    %v315 = vld [vmem:[#allocation2 + $0x20] sm:$0xff]
    %v316 = vld [vmem:[#allocation2 + $0x28] sm:$0xff]
    %v317 = vld [vmem:[#allocation2 + $0x30] sm:$0xff]
    %v318 = vld [vmem:[#allocation2 + $0x38] sm:$0xff]
    %v319 = vld [vmem:[#allocation2 + $0x40] sm:$0xff]
    %v320 = vld [vmem:[#allocation2 + $0x48] sm:$0xff]
    %v321 = vld [vmem:[#allocation2 + $0x50] sm:$0xff]
    %v322 = vld [vmem:[#allocation2 + $0x58] sm:$0xff]
    %v323 = vld [vmem:[#allocation2 + $0x60] sm:$0xff]
    %v324 = vld [vmem:[#allocation2 + $0x68] sm:$0xff]
    %v325 = vld [vmem:[#allocation2 + $0x70] sm:$0xff]
    %v326 = vld [vmem:[#allocation2 + $0x78] sm:$0xff]
    %v327 = vld [vmem:[%s2] sm:$0x1]
    %v329 = vlaneseq
    %v330 = vshrl.u32 %v329, 7
    %v331 = vsub.s32 0, %v330
    %v332 = vrot.slane %v327, %v331
    %v334 = vadd.f32 %v311, %v332
    %v335 = vadd.f32 %v312, %v332
    %v336 = vadd.f32 %v313, %v332
    %v337 = vadd.f32 %v314, %v332
    %v338 = vadd.f32 %v315, %v332
    %v339 = vadd.f32 %v316, %v332
    %v340 = vadd.f32 %v317, %v332
    %v341 = vadd.f32 %v318, %v332
    %v342 = vadd.f32 %v319, %v332
    %v343 = vadd.f32 %v320, %v332
    %v344 = vadd.f32 %v321, %v332
    %v345 = vadd.f32 %v322, %v332
    %v346 = vadd.f32 %v323, %v332
    %v347 = vadd.f32 %v324, %v332
    %v348 = vadd.f32 %v325, %v332
    %v349 = vadd.f32 %v326, %v332
    %v350 = vmax.f32 %v334, 0.0
    %v351 = vmax.f32 %v335, 0.0
    %v352 = vmax.f32 %v336, 0.0
    %v353 = vmax.f32 %v337, 0.0
    %v354 = vmax.f32 %v338, 0.0
    %v355 = vmax.f32 %v339, 0.0
    %v356 = vmax.f32 %v340, 0.0
    %v357 = vmax.f32 %v341, 0.0
    %v358 = vmax.f32 %v342, 0.0
    %v359 = vmax.f32 %v343, 0.0
    %v360 = vmax.f32 %v344, 0.0
    %v361 = vmax.f32 %v345, 0.0
    %v362 = vmax.f32 %v346, 0.0
    %v363 = vmax.f32 %v347, 0.0
    %v364 = vmax.f32 %v348, 0.0
    %v365 = vmax.f32 %v349, 0.0
    %366 = vst [vmem:[%s3] sm:$0xff] %v350
    %367 = vst [vmem:[%s3 + $0x8] sm:$0xff] %v351
    %368 = vst [vmem:[%s3 + $0x10] sm:$0xff] %v352
    %369 = vst [vmem:[%s3 + $0x18] sm:$0xff] %v353
    %370 = vst [vmem:[%s3 + $0x20] sm:$0xff] %v354
    %371 = vst [vmem:[%s3 + $0x28] sm:$0xff] %v355
    %372 = vst [vmem:[%s3 + $0x30] sm:$0xff] %v356
    %373 = vst [vmem:[%s3 + $0x38] sm:$0xff] %v357
    %374 = vst [vmem:[%s3 + $0x40] sm:$0xff] %v358
    %375 = vst [vmem:[%s3 + $0x48] sm:$0xff] %v359
    %376 = vst [vmem:[%s3 + $0x50] sm:$0xff] %v360
    %377 = vst [vmem:[%s3 + $0x58] sm:$0xff] %v361
    %378 = vst [vmem:[%s3 + $0x60] sm:$0xff] %v362
    %379 = vst [vmem:[%s3 + $0x68] sm:$0xff] %v363
    %380 = vst [vmem:[%s3 + $0x70] sm:$0xff] %v364
    %381 = vst [vmem:[%s3 + $0x78] sm:$0xff] %v365
  $region21: #{cdown_forward.1} parent=0 // pred_fallthru
    _
  // Predicated region
  $region22: #{cdown_forward.1} parent=0 // pred_check
    _
  $region23: #{cdown_forward.1} parent=0 // pred_check_branch
    %383 = sbr.rel (0) target = $region25
  $region24: #{cdown_forward.1} parent=0 // pred_region
    _
  $region25: #{cdown_forward.1} parent=0 // pred_fallthru
    _
  // Predicated region
  $region26: #{cdown_forward.1} parent=0 // pred_check
    _
  $region27: #{cdown_forward.1} parent=0 // pred_check_branch
    %385 = sbr.rel (0) target = $region29
  $region28: #{cdown_forward.1} parent=0 // pred_region
    _
  $region29: #{cdown_forward.1} parent=0 // pred_fallthru
    _

</llo_original>
